<compile_context>
chip_gen: v5e
topology: v5e:2x2
jax: 0.10.0
libtpu: 0.0.40
codegen_flags: <defaults>
</compile_context>

<pallas_src>
import math

import jax
import jax.numpy as jnp
from jax.experimental import pallas as pl
from jax.experimental.pallas import tpu as pltpu


# ---------------------------------------------------------------------------
# calc_length (length bookkeeping, plain JAX — mirrors the PyTorch helper)
# ---------------------------------------------------------------------------
def calc_length(lengths, padding, kernel_size, stride, ceil_mode, repeat_num=1):
    add_pad = float(padding * 2 - kernel_size)
    one = 1.0
    lengths = lengths.astype(jnp.float32)
    for _ in range(repeat_num):
        lengths = (lengths + add_pad) / stride + one
        lengths = jnp.ceil(lengths) if ceil_mode else jnp.floor(lengths)
    return lengths.astype(jnp.int32)


def _round_up(x, m):
    return ((x + m - 1) // m) * m


# ---------------------------------------------------------------------------
# Fused Pallas kernel: conv3x3(stride2, pad1, cin=1) + ReLU + flatten + Linear
# ---------------------------------------------------------------------------
def _make_fused_kernel(c_out, wo, mm_dtype):
    def kernel(taps_ref, cw_ref, cb_ref, lw_ref, lb_ref, o_ref, flat_ref):
        # taps_ref: (9, TR, wo)        lane-aligned stride-2 tap planes (VMEM)
        # cw_ref  : (c_out*9,)         conv weight, flat 1D (SMEM scalars)
        # cb_ref  : (c_out,)           conv bias (SMEM scalars)
        # lw_ref  : (c_out*wo, n_pad)  linear weight^T, zero-padded to >=128 lanes (VMEM)
        # lb_ref  : (1, n_pad)         linear bias, zero-padded (VMEM)
        # o_ref   : (TR, n_pad)        lane-dense output tile
        # flat_ref: (TR, c_out*wo)     VMEM scratch: flattened ReLU'd conv activation
        #
        # Stage 1: 3x3 / stride-2 / cin=1 conv per output channel on the VPU, each
        # channel written channel-major into the flattened scratch so stage 2 is a
        # single big-K matmul.
        # TODO(synk): at production conv_channels (hundreds) lower this loop to an MXU
        # matmul (rows, 9) @ (9, c_out) (or a lax.fori_loop over channel chunks with the
        # weights as a VMEM lane vector) instead of a full Python unroll of SMEM scalars.
        for c in range(c_out):
            y = cw_ref[c * 9] * taps_ref[0]
            for k in range(1, 9):
                y = y + cw_ref[c * 9 + k] * taps_ref[k]          # VPU scalar MAC
            flat_ref[:, c * wo:(c + 1) * wo] = jnp.maximum(y + cb_ref[c], 0.0)

        # Stage 2: ONE MXU matmul with K = c_out*wo (channel-combined), f32 accumulate,
        # lane-dense (>=128-wide) output store.
        acts = flat_ref[...].astype(mm_dtype)
        o_ref[...] = (jnp.dot(acts, lw_ref[...],
                              preferred_element_type=jnp.float32)
                      + lb_ref[...]).astype(o_ref.dtype)

    return kernel


# ---------------------------------------------------------------------------
# Module
# ---------------------------------------------------------------------------
class ConvSubsamplingPallas:
    def __init__(self, input_dim=16, feat_out=32, conv_channels=4,
                 subsampling_factor=2, key=None, mm_dtype=jnp.float32,
                 row_tile=256):
        if subsampling_factor % 2 != 0:
            raise ValueError("Sampling factor should be a multiply of 2!")
        self._sampling_num = int(math.log(subsampling_factor, 2))
        if self._sampling_num != 1:
            # TODO(synk): fused kernel covers the common subsampling_factor=2 case
            # (single conv stage, cin=1); deeper stacks would chain this kernel.
            raise NotImplementedError("Pallas path implemented for subsampling_factor=2")
        self._padding, self._stride, self._kernel_size = 1, 2, 3
        self._ceil_mode = False
        self.conv_channels = conv_channels
        self.feat_out = feat_out
        self.mm_dtype = mm_dtype          # set bf16 at production sizes (loosen test tol)
        self.row_tile = row_tile          # M rows per grid step (128 on v5e is also fine)

        if key is None:
            key = jax.random.PRNGKey(0)
        k_cw, k_cb, k_lw, k_lb = jax.random.split(key, 4)

        # Conv2d(1, C, 3, 2, 1) — torch-like uniform fan-in init
        fan_in = 1 * self._kernel_size * self._kernel_size
        s = 1.0 / math.sqrt(fan_in)
        self.conv_w = jax.random.uniform(k_cw, (conv_channels, 1, 3, 3),
                                         jnp.float32, -s, s)
        self.conv_b = jax.random.uniform(k_cb, (conv_channels,), jnp.float32, -s, s)

        out_len = int(calc_length(jnp.asarray(float(input_dim)), self._padding,
                                  self._kernel_size, self._stride,
                                  self._ceil_mode, self._sampling_num))
        self._freq_out = out_len
        lin_in = conv_channels * out_len
        s = 1.0 / math.sqrt(lin_in)
        # torch.nn.Linear weight is (out, in); store transposed for x @ W^T
        self.lin_w_t = jax.random.uniform(k_lw, (lin_in, feat_out), jnp.float32, -s, s)
        self.lin_b = jax.random.uniform(k_lb, (feat_out,), jnp.float32, -s, s)

    # -------------------- fused Pallas forward --------------------
    def __call__(self, x, lengths):
        lengths = calc_length(lengths, self._padding, self._kernel_size,
                              self._stride, self._ceil_mode, self._sampling_num)
        b, t, f = x.shape
        c_out, feat_out = self.conv_channels, self.feat_out
        ho = (t - 1) // 2 + 1                 # conv output time frames
        wo = (f - 1) // 2 + 1                 # conv output freq bins
        assert wo == self._freq_out, (wo, self._freq_out)
        k_dim = c_out * wo

        # conv padding=1 in XLA, then the 9 lane-aligned stride-2 tap planes:
        #   taps[kt*3+kf, (b,to), fo] = xpad[b, 2*to+kt, 2*fo+kf]
        # Built wrapper-side (~2.25x input traffic) so no in-kernel misaligned slices.
        xpad = jnp.pad(x, ((0, 0), (1, 1), (1, 1)))
        taps = jnp.stack(
            [xpad[:, kt:kt + 2 * ho:2, kf:kf + 2 * wo:2]
             for kt in range(3) for kf in range(3)], axis=0)      # (9, b, ho, wo)
        rows = b * ho
        taps = taps.reshape(9, rows, wo)

        # Row tiling: large M per grid step (fills MXU M, amortizes ~0.35us/step);
        # the "parallel" row axis also feeds both v7x TensorCores at small batch.
        if rows <= self.row_tile:
            tr = max(8, _round_up(rows, 8))
        else:
            tr = _round_up(self.row_tile, 8)
        rows_pad = _round_up(rows, tr)
        if rows_pad != rows:
            taps = jnp.pad(taps, ((0, 0), (0, rows_pad - rows), (0, 0)))
        num_tiles = rows_pad // tr

        # Lane-dense output: pad the Linear N dim to a multiple of 128 lanes so the
        # store is an unmasked vst (feat_out=32 alone would be masked). Same MXU cost;
        # padded columns are sliced off below.
        n_pad = _round_up(feat_out, 128)
        lw = jnp.pad(self.lin_w_t, ((0, 0), (0, n_pad - feat_out))).astype(self.mm_dtype)
        lb = jnp.pad(self.lin_b, (0, n_pad - feat_out)).reshape(1, n_pad)

        cw = self.conv_w.reshape(c_out * 9)   # flat 1D SMEM (no 9->128 lane padding)
        cb = self.conv_b

        flops = 2 * rows_pad * c_out * wo * 9 + 2 * rows_pad * k_dim * n_pad
        bytes_accessed = 4 * (taps.size + cw.size + cb.size + lw.size + lb.size
                              + rows_pad * n_pad)

        out_flat = pl.pallas_call(
            _make_fused_kernel(c_out, wo, self.mm_dtype),
            out_shape=jax.ShapeDtypeStruct((rows_pad, n_pad), jnp.float32),
            grid=(num_tiles,),
            in_specs=[
                pl.BlockSpec((9, tr, wo), lambda i: (0, i, 0)),
                pl.BlockSpec(memory_space=pltpu.MemorySpace.SMEM),   # conv weight (1D)
                pl.BlockSpec(memory_space=pltpu.MemorySpace.SMEM),   # conv bias  (1D)
                # TODO(synk): at production c_out*wo, K-tile this weight over an extra
                # "arbitrary" grid axis (+ f32 accumulator, pl.when init/finalize) and
                # store it bf16 so it fits v7x's 64 MiB VMEM / v5e's 16 MiB scoped limit.
                pl.BlockSpec((k_dim, n_pad), lambda i: (0, 0)),
                pl.BlockSpec((1, n_pad), lambda i: (0, 0)),
            ],
            out_specs=pl.BlockSpec((tr, n_pad), lambda i: (i, 0)),
            scratch_shapes=[pltpu.VMEM((tr, k_dim), jnp.float32)],
            compiler_params=pltpu.CompilerParams(
                dimension_semantics=("parallel",)),
            cost_estimate=pl.CostEstimate(
                flops=flops, transcendentals=0, bytes_accessed=bytes_accessed),
        )(taps, cw, cb, lw, lb)

        out = out_flat[:rows, :feat_out].reshape(b, ho, feat_out)
        return out, lengths

    # -------------------- pure-JAX reference (verification) --------------------
    def reference(self, x, lengths):
        lengths = calc_length(lengths, self._padding, self._kernel_size,
                              self._stride, self._ceil_mode, self._sampling_num)
        h = x[:, None, :, :]
        h = jax.lax.conv_general_dilated(
            h, self.conv_w, window_strides=(2, 2), padding=((1, 1), (1, 1)),
            dimension_numbers=("NCHW", "OIHW", "NCHW"))
        h = jnp.maximum(h + self.conv_b[None, :, None, None], 0.0)
        b, c, t2, f2 = h.shape
        hl = h.transpose(0, 2, 1, 3).reshape(b, t2, c * f2)
        out = hl @ self.lin_w_t + self.lin_b
        return out, lengths


if __name__ == "__main__":
    key = jax.random.PRNGKey(0)
    kx, kparam = jax.random.split(key, 2)

    B, T, F = 2, 16, 16
    feat_out, conv_channels = 32, 4

    model = ConvSubsamplingPallas(input_dim=F, feat_out=feat_out,
                                  conv_channels=conv_channels,
                                  subsampling_factor=2, key=kparam)

    x = jax.random.normal(kx, (B, T, F), dtype=jnp.float32)
    lengths = jnp.array([16, 12], dtype=jnp.int32)

    out, out_lens = model(x, lengths)
    out, out_lens = jax.block_until_ready((out, out_lens))

    ref_out, ref_lens = model.reference(x, lengths)
    assert out.shape == (B, 8, feat_out), out.shape
    assert jnp.array_equal(out_lens, ref_lens)
    err = float(jnp.max(jnp.abs(out - ref_out)))
    assert jnp.allclose(out, ref_out, atol=1e-4, rtol=1e-4), err

    print("KERNEL_OK")
</pallas_src>

<mosaic_0001>
module attributes {stable_mosaic.version = 11 : i64} {
  func.func @kernel(%arg0: i32, %arg1: memref<9x16x8xf32, #tpu.memory_space<vmem>>, %arg2: memref<36xf32, #tpu.memory_space<smem>>, %arg3: memref<4xf32, #tpu.memory_space<smem>>, %arg4: memref<32x128xf32, #tpu.memory_space<vmem>>, %arg5: memref<1x128xf32, #tpu.memory_space<vmem>>, %arg6: memref<16x128xf32, #tpu.memory_space<vmem>>, %arg7: memref<16x32xf32, #tpu.memory_space<vmem>>) attributes {dimension_semantics = [#tpu.dimension_semantics<parallel>], iteration_bounds = array<i64: 1>, scalar_prefetch = 0 : i64, scratch_operands = 1 : i64, tpu.core_type = #tpu.core_type<tc>, window_params = [{transform_indices = @transform_0, window_bounds = array<i64: 9, 16, 8>}, {transform_indices = @transform_1, window_bounds = array<i64: 36>}, {transform_indices = @transform_2, window_bounds = array<i64: 4>}, {pipeline_mode = #tpu.pipeline_mode<synchronous>, transform_indices = @transform_3, window_bounds = array<i64: 32, 128>}, {pipeline_mode = #tpu.pipeline_mode<synchronous>, transform_indices = @transform_4, window_bounds = array<i64: 1, 128>}, {transform_indices = @transform_5, window_bounds = array<i64: 16, 128>}]} {
    %c0 = arith.constant 0 : index
    %0 = memref.load %arg2[%c0] : memref<36xf32, #tpu.memory_space<smem>>
    %c0_0 = arith.constant 0 : index
    %c0_1 = arith.constant 0 : index
    %c0_2 = arith.constant 0 : index
    %1 = vector.load %arg1[%c0_0, %c0_1, %c0_2] : memref<9x16x8xf32, #tpu.memory_space<vmem>>, vector<1x16x8xf32>
    %2 = vector.shape_cast %1 : vector<1x16x8xf32> to vector<16x8xf32>
    %3 = vector.broadcast %0 : f32 to vector<16x8xf32>
    %4 = arith.mulf %3, %2 : vector<16x8xf32>
    %c1 = arith.constant 1 : index
    %5 = memref.load %arg2[%c1] : memref<36xf32, #tpu.memory_space<smem>>
    %c1_3 = arith.constant 1 : index
    %c0_4 = arith.constant 0 : index
    %c0_5 = arith.constant 0 : index
    %6 = vector.load %arg1[%c1_3, %c0_4, %c0_5] : memref<9x16x8xf32, #tpu.memory_space<vmem>>, vector<1x16x8xf32>
    %7 = vector.shape_cast %6 : vector<1x16x8xf32> to vector<16x8xf32>
    %8 = vector.broadcast %5 : f32 to vector<16x8xf32>
    %9 = arith.mulf %8, %7 : vector<16x8xf32>
    %10 = arith.addf %4, %9 : vector<16x8xf32>
    %c2 = arith.constant 2 : index
    %11 = memref.load %arg2[%c2] : memref<36xf32, #tpu.memory_space<smem>>
    %c2_6 = arith.constant 2 : index
    %c0_7 = arith.constant 0 : index
    %c0_8 = arith.constant 0 : index
    %12 = vector.load %arg1[%c2_6, %c0_7, %c0_8] : memref<9x16x8xf32, #tpu.memory_space<vmem>>, vector<1x16x8xf32>
    %13 = vector.shape_cast %12 : vector<1x16x8xf32> to vector<16x8xf32>
    %14 = vector.broadcast %11 : f32 to vector<16x8xf32>
    %15 = arith.mulf %14, %13 : vector<16x8xf32>
    %16 = arith.addf %10, %15 : vector<16x8xf32>
    %c3 = arith.constant 3 : index
    %17 = memref.load %arg2[%c3] : memref<36xf32, #tpu.memory_space<smem>>
    %c3_9 = arith.constant 3 : index
    %c0_10 = arith.constant 0 : index
    %c0_11 = arith.constant 0 : index
    %18 = vector.load %arg1[%c3_9, %c0_10, %c0_11] : memref<9x16x8xf32, #tpu.memory_space<vmem>>, vector<1x16x8xf32>
    %19 = vector.shape_cast %18 : vector<1x16x8xf32> to vector<16x8xf32>
    %20 = vector.broadcast %17 : f32 to vector<16x8xf32>
    %21 = arith.mulf %20, %19 : vector<16x8xf32>
    %22 = arith.addf %16, %21 : vector<16x8xf32>
    %c4 = arith.constant 4 : index
    %23 = memref.load %arg2[%c4] : memref<36xf32, #tpu.memory_space<smem>>
    %c4_12 = arith.constant 4 : index
    %c0_13 = arith.constant 0 : index
    %c0_14 = arith.constant 0 : index
    %24 = vector.load %arg1[%c4_12, %c0_13, %c0_14] : memref<9x16x8xf32, #tpu.memory_space<vmem>>, vector<1x16x8xf32>
    %25 = vector.shape_cast %24 : vector<1x16x8xf32> to vector<16x8xf32>
    %26 = vector.broadcast %23 : f32 to vector<16x8xf32>
    %27 = arith.mulf %26, %25 : vector<16x8xf32>
    %28 = arith.addf %22, %27 : vector<16x8xf32>
    %c5 = arith.constant 5 : index
    %29 = memref.load %arg2[%c5] : memref<36xf32, #tpu.memory_space<smem>>
    %c5_15 = arith.constant 5 : index
    %c0_16 = arith.constant 0 : index
    %c0_17 = arith.constant 0 : index
    %30 = vector.load %arg1[%c5_15, %c0_16, %c0_17] : memref<9x16x8xf32, #tpu.memory_space<vmem>>, vector<1x16x8xf32>
    %31 = vector.shape_cast %30 : vector<1x16x8xf32> to vector<16x8xf32>
    %32 = vector.broadcast %29 : f32 to vector<16x8xf32>
    %33 = arith.mulf %32, %31 : vector<16x8xf32>
    %34 = arith.addf %28, %33 : vector<16x8xf32>
    %c6 = arith.constant 6 : index
    %35 = memref.load %arg2[%c6] : memref<36xf32, #tpu.memory_space<smem>>
    %c6_18 = arith.constant 6 : index
    %c0_19 = arith.constant 0 : index
    %c0_20 = arith.constant 0 : index
    %36 = vector.load %arg1[%c6_18, %c0_19, %c0_20] : memref<9x16x8xf32, #tpu.memory_space<vmem>>, vector<1x16x8xf32>
    %37 = vector.shape_cast %36 : vector<1x16x8xf32> to vector<16x8xf32>
    %38 = vector.broadcast %35 : f32 to vector<16x8xf32>
    %39 = arith.mulf %38, %37 : vector<16x8xf32>
    %40 = arith.addf %34, %39 : vector<16x8xf32>
    %c7 = arith.constant 7 : index
    %41 = memref.load %arg2[%c7] : memref<36xf32, #tpu.memory_space<smem>>
    %c7_21 = arith.constant 7 : index
    %c0_22 = arith.constant 0 : index
    %c0_23 = arith.constant 0 : index
    %42 = vector.load %arg1[%c7_21, %c0_22, %c0_23] : memref<9x16x8xf32, #tpu.memory_space<vmem>>, vector<1x16x8xf32>
    %43 = vector.shape_cast %42 : vector<1x16x8xf32> to vector<16x8xf32>
    %44 = vector.broadcast %41 : f32 to vector<16x8xf32>
    %45 = arith.mulf %44, %43 : vector<16x8xf32>
    %46 = arith.addf %40, %45 : vector<16x8xf32>
    %c8 = arith.constant 8 : index
    %47 = memref.load %arg2[%c8] : memref<36xf32, #tpu.memory_space<smem>>
    %c8_24 = arith.constant 8 : index
    %c0_25 = arith.constant 0 : index
    %c0_26 = arith.constant 0 : index
    %48 = vector.load %arg1[%c8_24, %c0_25, %c0_26] : memref<9x16x8xf32, #tpu.memory_space<vmem>>, vector<1x16x8xf32>
    %49 = vector.shape_cast %48 : vector<1x16x8xf32> to vector<16x8xf32>
    %50 = vector.broadcast %47 : f32 to vector<16x8xf32>
    %51 = arith.mulf %50, %49 : vector<16x8xf32>
    %52 = arith.addf %46, %51 : vector<16x8xf32>
    %c0_27 = arith.constant 0 : index
    %53 = memref.load %arg3[%c0_27] : memref<4xf32, #tpu.memory_space<smem>>
    %54 = vector.broadcast %53 : f32 to vector<16x8xf32>
    %55 = arith.addf %52, %54 : vector<16x8xf32>
    %cst = arith.constant 0.000000e+00 : f32
    %56 = vector.broadcast %cst : f32 to vector<16x8xf32>
    %57 = arith.maximumf %55, %56 : vector<16x8xf32>
    %c0_28 = arith.constant 0 : index
    %c0_29 = arith.constant 0 : index
    %58 = vector.load %arg7[%c0_28, %c0_29] : memref<16x32xf32, #tpu.memory_space<vmem>>, vector<16x8xf32>
    tpu.vector_store %arg7[%c0_28, %c0_29], %57 {strides = array<i32>} : memref<16x32xf32, #tpu.memory_space<vmem>>, vector<16x8xf32>,
    %c9 = arith.constant 9 : index
    %59 = memref.load %arg2[%c9] : memref<36xf32, #tpu.memory_space<smem>>
    %c0_30 = arith.constant 0 : index
    %c0_31 = arith.constant 0 : index
    %c0_32 = arith.constant 0 : index
    %60 = vector.load %arg1[%c0_30, %c0_31, %c0_32] : memref<9x16x8xf32, #tpu.memory_space<vmem>>, vector<1x16x8xf32>
    %61 = vector.shape_cast %60 : vector<1x16x8xf32> to vector<16x8xf32>
    %62 = vector.broadcast %59 : f32 to vector<16x8xf32>
    %63 = arith.mulf %62, %61 : vector<16x8xf32>
    %c10 = arith.constant 10 : index
    %64 = memref.load %arg2[%c10] : memref<36xf32, #tpu.memory_space<smem>>
    %c1_33 = arith.constant 1 : index
    %c0_34 = arith.constant 0 : index
    %c0_35 = arith.constant 0 : index
    %65 = vector.load %arg1[%c1_33, %c0_34, %c0_35] : memref<9x16x8xf32, #tpu.memory_space<vmem>>, vector<1x16x8xf32>
    %66 = vector.shape_cast %65 : vector<1x16x8xf32> to vector<16x8xf32>
    %67 = vector.broadcast %64 : f32 to vector<16x8xf32>
    %68 = arith.mulf %67, %66 : vector<16x8xf32>
    %69 = arith.addf %63, %68 : vector<16x8xf32>
    %c11 = arith.constant 11 : index
    %70 = memref.load %arg2[%c11] : memref<36xf32, #tpu.memory_space<smem>>
    %c2_36 = arith.constant 2 : index
    %c0_37 = arith.constant 0 : index
    %c0_38 = arith.constant 0 : index
    %71 = vector.load %arg1[%c2_36, %c0_37, %c0_38] : memref<9x16x8xf32, #tpu.memory_space<vmem>>, vector<1x16x8xf32>
    %72 = vector.shape_cast %71 : vector<1x16x8xf32> to vector<16x8xf32>
    %73 = vector.broadcast %70 : f32 to vector<16x8xf32>
    %74 = arith.mulf %73, %72 : vector<16x8xf32>
    %75 = arith.addf %69, %74 : vector<16x8xf32>
    %c12 = arith.constant 12 : index
    %76 = memref.load %arg2[%c12] : memref<36xf32, #tpu.memory_space<smem>>
    %c3_39 = arith.constant 3 : index
    %c0_40 = arith.constant 0 : index
    %c0_41 = arith.constant 0 : index
    %77 = vector.load %arg1[%c3_39, %c0_40, %c0_41] : memref<9x16x8xf32, #tpu.memory_space<vmem>>, vector<1x16x8xf32>
    %78 = vector.shape_cast %77 : vector<1x16x8xf32> to vector<16x8xf32>
    %79 = vector.broadcast %76 : f32 to vector<16x8xf32>
    %80 = arith.mulf %79, %78 : vector<16x8xf32>
    %81 = arith.addf %75, %80 : vector<16x8xf32>
    %c13 = arith.constant 13 : index
    %82 = memref.load %arg2[%c13] : memref<36xf32, #tpu.memory_space<smem>>
    %c4_42 = arith.constant 4 : index
    %c0_43 = arith.constant 0 : index
    %c0_44 = arith.constant 0 : index
    %83 = vector.load %arg1[%c4_42, %c0_43, %c0_44] : memref<9x16x8xf32, #tpu.memory_space<vmem>>, vector<1x16x8xf32>
    %84 = vector.shape_cast %83 : vector<1x16x8xf32> to vector<16x8xf32>
    %85 = vector.broadcast %82 : f32 to vector<16x8xf32>
    %86 = arith.mulf %85, %84 : vector<16x8xf32>
    %87 = arith.addf %81, %86 : vector<16x8xf32>
    %c14 = arith.constant 14 : index
    %88 = memref.load %arg2[%c14] : memref<36xf32, #tpu.memory_space<smem>>
    %c5_45 = arith.constant 5 : index
    %c0_46 = arith.constant 0 : index
    %c0_47 = arith.constant 0 : index
    %89 = vector.load %arg1[%c5_45, %c0_46, %c0_47] : memref<9x16x8xf32, #tpu.memory_space<vmem>>, vector<1x16x8xf32>
    %90 = vector.shape_cast %89 : vector<1x16x8xf32> to vector<16x8xf32>
    %91 = vector.broadcast %88 : f32 to vector<16x8xf32>
    %92 = arith.mulf %91, %90 : vector<16x8xf32>
    %93 = arith.addf %87, %92 : vector<16x8xf32>
    %c15 = arith.constant 15 : index
    %94 = memref.load %arg2[%c15] : memref<36xf32, #tpu.memory_space<smem>>
    %c6_48 = arith.constant 6 : index
    %c0_49 = arith.constant 0 : index
    %c0_50 = arith.constant 0 : index
    %95 = vector.load %arg1[%c6_48, %c0_49, %c0_50] : memref<9x16x8xf32, #tpu.memory_space<vmem>>, vector<1x16x8xf32>
    %96 = vector.shape_cast %95 : vector<1x16x8xf32> to vector<16x8xf32>
    %97 = vector.broadcast %94 : f32 to vector<16x8xf32>
    %98 = arith.mulf %97, %96 : vector<16x8xf32>
    %99 = arith.addf %93, %98 : vector<16x8xf32>
    %c16 = arith.constant 16 : index
    %100 = memref.load %arg2[%c16] : memref<36xf32, #tpu.memory_space<smem>>
    %c7_51 = arith.constant 7 : index
    %c0_52 = arith.constant 0 : index
    %c0_53 = arith.constant 0 : index
    %101 = vector.load %arg1[%c7_51, %c0_52, %c0_53] : memref<9x16x8xf32, #tpu.memory_space<vmem>>, vector<1x16x8xf32>
    %102 = vector.shape_cast %101 : vector<1x16x8xf32> to vector<16x8xf32>
    %103 = vector.broadcast %100 : f32 to vector<16x8xf32>
    %104 = arith.mulf %103, %102 : vector<16x8xf32>
    %105 = arith.addf %99, %104 : vector<16x8xf32>
    %c17 = arith.constant 17 : index
    %106 = memref.load %arg2[%c17] : memref<36xf32, #tpu.memory_space<smem>>
    %c8_54 = arith.constant 8 : index
    %c0_55 = arith.constant 0 : index
    %c0_56 = arith.constant 0 : index
    %107 = vector.load %arg1[%c8_54, %c0_55, %c0_56] : memref<9x16x8xf32, #tpu.memory_space<vmem>>, vector<1x16x8xf32>
    %108 = vector.shape_cast %107 : vector<1x16x8xf32> to vector<16x8xf32>
    %109 = vector.broadcast %106 : f32 to vector<16x8xf32>
    %110 = arith.mulf %109, %108 : vector<16x8xf32>
    %111 = arith.addf %105, %110 : vector<16x8xf32>
    %c1_57 = arith.constant 1 : index
    %112 = memref.load %arg3[%c1_57] : memref<4xf32, #tpu.memory_space<smem>>
    %113 = vector.broadcast %112 : f32 to vector<16x8xf32>
    %114 = arith.addf %111, %113 : vector<16x8xf32>
    %cst_58 = arith.constant 0.000000e+00 : f32
    %115 = vector.broadcast %cst_58 : f32 to vector<16x8xf32>
    %116 = arith.maximumf %114, %115 : vector<16x8xf32>
    %c0_59 = arith.constant 0 : index
    %c8_60 = arith.constant 8 : index
    %117 = vector.load %arg7[%c0_59, %c8_60] : memref<16x32xf32, #tpu.memory_space<vmem>>, vector<16x8xf32>
    tpu.vector_store %arg7[%c0_59, %c8_60], %116 {strides = array<i32>} : memref<16x32xf32, #tpu.memory_space<vmem>>, vector<16x8xf32>,
    %c18 = arith.constant 18 : index
    %118 = memref.load %arg2[%c18] : memref<36xf32, #tpu.memory_space<smem>>
    %c0_61 = arith.constant 0 : index
    %c0_62 = arith.constant 0 : index
    %c0_63 = arith.constant 0 : index
    %119 = vector.load %arg1[%c0_61, %c0_62, %c0_63] : memref<9x16x8xf32, #tpu.memory_space<vmem>>, vector<1x16x8xf32>
    %120 = vector.shape_cast %119 : vector<1x16x8xf32> to vector<16x8xf32>
    %121 = vector.broadcast %118 : f32 to vector<16x8xf32>
    %122 = arith.mulf %121, %120 : vector<16x8xf32>
    %c19 = arith.constant 19 : index
    %123 = memref.load %arg2[%c19] : memref<36xf32, #tpu.memory_space<smem>>
    %c1_64 = arith.constant 1 : index
    %c0_65 = arith.constant 0 : index
    %c0_66 = arith.constant 0 : index
    %124 = vector.load %arg1[%c1_64, %c0_65, %c0_66] : memref<9x16x8xf32, #tpu.memory_space<vmem>>, vector<1x16x8xf32>
    %125 = vector.shape_cast %124 : vector<1x16x8xf32> to vector<16x8xf32>
    %126 = vector.broadcast %123 : f32 to vector<16x8xf32>
    %127 = arith.mulf %126, %125 : vector<16x8xf32>
    %128 = arith.addf %122, %127 : vector<16x8xf32>
    %c20 = arith.constant 20 : index
    %129 = memref.load %arg2[%c20] : memref<36xf32, #tpu.memory_space<smem>>
    %c2_67 = arith.constant 2 : index
    %c0_68 = arith.constant 0 : index
    %c0_69 = arith.constant 0 : index
    %130 = vector.load %arg1[%c2_67, %c0_68, %c0_69] : memref<9x16x8xf32, #tpu.memory_space<vmem>>, vector<1x16x8xf32>
    %131 = vector.shape_cast %130 : vector<1x16x8xf32> to vector<16x8xf32>
    %132 = vector.broadcast %129 : f32 to vector<16x8xf32>
    %133 = arith.mulf %132, %131 : vector<16x8xf32>
    %134 = arith.addf %128, %133 : vector<16x8xf32>
    %c21 = arith.constant 21 : index
    %135 = memref.load %arg2[%c21] : memref<36xf32, #tpu.memory_space<smem>>
    %c3_70 = arith.constant 3 : index
    %c0_71 = arith.constant 0 : index
    %c0_72 = arith.constant 0 : index
    %136 = vector.load %arg1[%c3_70, %c0_71, %c0_72] : memref<9x16x8xf32, #tpu.memory_space<vmem>>, vector<1x16x8xf32>
    %137 = vector.shape_cast %136 : vector<1x16x8xf32> to vector<16x8xf32>
    %138 = vector.broadcast %135 : f32 to vector<16x8xf32>
    %139 = arith.mulf %138, %137 : vector<16x8xf32>
    %140 = arith.addf %134, %139 : vector<16x8xf32>
    %c22 = arith.constant 22 : index
    %141 = memref.load %arg2[%c22] : memref<36xf32, #tpu.memory_space<smem>>
    %c4_73 = arith.constant 4 : index
    %c0_74 = arith.constant 0 : index
    %c0_75 = arith.constant 0 : index
    %142 = vector.load %arg1[%c4_73, %c0_74, %c0_75] : memref<9x16x8xf32, #tpu.memory_space<vmem>>, vector<1x16x8xf32>
    %143 = vector.shape_cast %142 : vector<1x16x8xf32> to vector<16x8xf32>
    %144 = vector.broadcast %141 : f32 to vector<16x8xf32>
    %145 = arith.mulf %144, %143 : vector<16x8xf32>
    %146 = arith.addf %140, %145 : vector<16x8xf32>
    %c23 = arith.constant 23 : index
    %147 = memref.load %arg2[%c23] : memref<36xf32, #tpu.memory_space<smem>>
    %c5_76 = arith.constant 5 : index
    %c0_77 = arith.constant 0 : index
    %c0_78 = arith.constant 0 : index
    %148 = vector.load %arg1[%c5_76, %c0_77, %c0_78] : memref<9x16x8xf32, #tpu.memory_space<vmem>>, vector<1x16x8xf32>
    %149 = vector.shape_cast %148 : vector<1x16x8xf32> to vector<16x8xf32>
    %150 = vector.broadcast %147 : f32 to vector<16x8xf32>
    %151 = arith.mulf %150, %149 : vector<16x8xf32>
    %152 = arith.addf %146, %151 : vector<16x8xf32>
    %c24 = arith.constant 24 : index
    %153 = memref.load %arg2[%c24] : memref<36xf32, #tpu.memory_space<smem>>
    %c6_79 = arith.constant 6 : index
    %c0_80 = arith.constant 0 : index
    %c0_81 = arith.constant 0 : index
    %154 = vector.load %arg1[%c6_79, %c0_80, %c0_81] : memref<9x16x8xf32, #tpu.memory_space<vmem>>, vector<1x16x8xf32>
    %155 = vector.shape_cast %154 : vector<1x16x8xf32> to vector<16x8xf32>
    %156 = vector.broadcast %153 : f32 to vector<16x8xf32>
    %157 = arith.mulf %156, %155 : vector<16x8xf32>
    %158 = arith.addf %152, %157 : vector<16x8xf32>
    %c25 = arith.constant 25 : index
    %159 = memref.load %arg2[%c25] : memref<36xf32, #tpu.memory_space<smem>>
    %c7_82 = arith.constant 7 : index
    %c0_83 = arith.constant 0 : index
    %c0_84 = arith.constant 0 : index
    %160 = vector.load %arg1[%c7_82, %c0_83, %c0_84] : memref<9x16x8xf32, #tpu.memory_space<vmem>>, vector<1x16x8xf32>
    %161 = vector.shape_cast %160 : vector<1x16x8xf32> to vector<16x8xf32>
    %162 = vector.broadcast %159 : f32 to vector<16x8xf32>
    %163 = arith.mulf %162, %161 : vector<16x8xf32>
    %164 = arith.addf %158, %163 : vector<16x8xf32>
    %c26 = arith.constant 26 : index
    %165 = memref.load %arg2[%c26] : memref<36xf32, #tpu.memory_space<smem>>
    %c8_85 = arith.constant 8 : index
    %c0_86 = arith.constant 0 : index
    %c0_87 = arith.constant 0 : index
    %166 = vector.load %arg1[%c8_85, %c0_86, %c0_87] : memref<9x16x8xf32, #tpu.memory_space<vmem>>, vector<1x16x8xf32>
    %167 = vector.shape_cast %166 : vector<1x16x8xf32> to vector<16x8xf32>
    %168 = vector.broadcast %165 : f32 to vector<16x8xf32>
    %169 = arith.mulf %168, %167 : vector<16x8xf32>
    %170 = arith.addf %164, %169 : vector<16x8xf32>
    %c2_88 = arith.constant 2 : index
    %171 = memref.load %arg3[%c2_88] : memref<4xf32, #tpu.memory_space<smem>>
    %172 = vector.broadcast %171 : f32 to vector<16x8xf32>
    %173 = arith.addf %170, %172 : vector<16x8xf32>
    %cst_89 = arith.constant 0.000000e+00 : f32
    %174 = vector.broadcast %cst_89 : f32 to vector<16x8xf32>
    %175 = arith.maximumf %173, %174 : vector<16x8xf32>
    %c0_90 = arith.constant 0 : index
    %c16_91 = arith.constant 16 : index
    %176 = vector.load %arg7[%c0_90, %c16_91] : memref<16x32xf32, #tpu.memory_space<vmem>>, vector<16x8xf32>
    tpu.vector_store %arg7[%c0_90, %c16_91], %175 {strides = array<i32>} : memref<16x32xf32, #tpu.memory_space<vmem>>, vector<16x8xf32>,
    %c27 = arith.constant 27 : index
    %177 = memref.load %arg2[%c27] : memref<36xf32, #tpu.memory_space<smem>>
    %c0_92 = arith.constant 0 : index
    %c0_93 = arith.constant 0 : index
    %c0_94 = arith.constant 0 : index
    %178 = vector.load %arg1[%c0_92, %c0_93, %c0_94] : memref<9x16x8xf32, #tpu.memory_space<vmem>>, vector<1x16x8xf32>
    %179 = vector.shape_cast %178 : vector<1x16x8xf32> to vector<16x8xf32>
    %180 = vector.broadcast %177 : f32 to vector<16x8xf32>
    %181 = arith.mulf %180, %179 : vector<16x8xf32>
    %c28 = arith.constant 28 : index
    %182 = memref.load %arg2[%c28] : memref<36xf32, #tpu.memory_space<smem>>
    %c1_95 = arith.constant 1 : index
    %c0_96 = arith.constant 0 : index
    %c0_97 = arith.constant 0 : index
    %183 = vector.load %arg1[%c1_95, %c0_96, %c0_97] : memref<9x16x8xf32, #tpu.memory_space<vmem>>, vector<1x16x8xf32>
    %184 = vector.shape_cast %183 : vector<1x16x8xf32> to vector<16x8xf32>
    %185 = vector.broadcast %182 : f32 to vector<16x8xf32>
    %186 = arith.mulf %185, %184 : vector<16x8xf32>
    %187 = arith.addf %181, %186 : vector<16x8xf32>
    %c29 = arith.constant 29 : index
    %188 = memref.load %arg2[%c29] : memref<36xf32, #tpu.memory_space<smem>>
    %c2_98 = arith.constant 2 : index
    %c0_99 = arith.constant 0 : index
    %c0_100 = arith.constant 0 : index
    %189 = vector.load %arg1[%c2_98, %c0_99, %c0_100] : memref<9x16x8xf32, #tpu.memory_space<vmem>>, vector<1x16x8xf32>
    %190 = vector.shape_cast %189 : vector<1x16x8xf32> to vector<16x8xf32>
    %191 = vector.broadcast %188 : f32 to vector<16x8xf32>
    %192 = arith.mulf %191, %190 : vector<16x8xf32>
    %193 = arith.addf %187, %192 : vector<16x8xf32>
    %c30 = arith.constant 30 : index
    %194 = memref.load %arg2[%c30] : memref<36xf32, #tpu.memory_space<smem>>
    %c3_101 = arith.constant 3 : index
    %c0_102 = arith.constant 0 : index
    %c0_103 = arith.constant 0 : index
    %195 = vector.load %arg1[%c3_101, %c0_102, %c0_103] : memref<9x16x8xf32, #tpu.memory_space<vmem>>, vector<1x16x8xf32>
    %196 = vector.shape_cast %195 : vector<1x16x8xf32> to vector<16x8xf32>
    %197 = vector.broadcast %194 : f32 to vector<16x8xf32>
    %198 = arith.mulf %197, %196 : vector<16x8xf32>
    %199 = arith.addf %193, %198 : vector<16x8xf32>
    %c31 = arith.constant 31 : index
    %200 = memref.load %arg2[%c31] : memref<36xf32, #tpu.memory_space<smem>>
    %c4_104 = arith.constant 4 : index
    %c0_105 = arith.constant 0 : index
    %c0_106 = arith.constant 0 : index
    %201 = vector.load %arg1[%c4_104, %c0_105, %c0_106] : memref<9x16x8xf32, #tpu.memory_space<vmem>>, vector<1x16x8xf32>
    %202 = vector.shape_cast %201 : vector<1x16x8xf32> to vector<16x8xf32>
    %203 = vector.broadcast %200 : f32 to vector<16x8xf32>
    %204 = arith.mulf %203, %202 : vector<16x8xf32>
    %205 = arith.addf %199, %204 : vector<16x8xf32>
    %c32 = arith.constant 32 : index
    %206 = memref.load %arg2[%c32] : memref<36xf32, #tpu.memory_space<smem>>
    %c5_107 = arith.constant 5 : index
    %c0_108 = arith.constant 0 : index
    %c0_109 = arith.constant 0 : index
    %207 = vector.load %arg1[%c5_107, %c0_108, %c0_109] : memref<9x16x8xf32, #tpu.memory_space<vmem>>, vector<1x16x8xf32>
    %208 = vector.shape_cast %207 : vector<1x16x8xf32> to vector<16x8xf32>
    %209 = vector.broadcast %206 : f32 to vector<16x8xf32>
    %210 = arith.mulf %209, %208 : vector<16x8xf32>
    %211 = arith.addf %205, %210 : vector<16x8xf32>
    %c33 = arith.constant 33 : index
    %212 = memref.load %arg2[%c33] : memref<36xf32, #tpu.memory_space<smem>>
    %c6_110 = arith.constant 6 : index
    %c0_111 = arith.constant 0 : index
    %c0_112 = arith.constant 0 : index
    %213 = vector.load %arg1[%c6_110, %c0_111, %c0_112] : memref<9x16x8xf32, #tpu.memory_space<vmem>>, vector<1x16x8xf32>
    %214 = vector.shape_cast %213 : vector<1x16x8xf32> to vector<16x8xf32>
    %215 = vector.broadcast %212 : f32 to vector<16x8xf32>
    %216 = arith.mulf %215, %214 : vector<16x8xf32>
    %217 = arith.addf %211, %216 : vector<16x8xf32>
    %c34 = arith.constant 34 : index
    %218 = memref.load %arg2[%c34] : memref<36xf32, #tpu.memory_space<smem>>
    %c7_113 = arith.constant 7 : index
    %c0_114 = arith.constant 0 : index
    %c0_115 = arith.constant 0 : index
    %219 = vector.load %arg1[%c7_113, %c0_114, %c0_115] : memref<9x16x8xf32, #tpu.memory_space<vmem>>, vector<1x16x8xf32>
    %220 = vector.shape_cast %219 : vector<1x16x8xf32> to vector<16x8xf32>
    %221 = vector.broadcast %218 : f32 to vector<16x8xf32>
    %222 = arith.mulf %221, %220 : vector<16x8xf32>
    %223 = arith.addf %217, %222 : vector<16x8xf32>
    %c35 = arith.constant 35 : index
    %224 = memref.load %arg2[%c35] : memref<36xf32, #tpu.memory_space<smem>>
    %c8_116 = arith.constant 8 : index
    %c0_117 = arith.constant 0 : index
    %c0_118 = arith.constant 0 : index
    %225 = vector.load %arg1[%c8_116, %c0_117, %c0_118] : memref<9x16x8xf32, #tpu.memory_space<vmem>>, vector<1x16x8xf32>
    %226 = vector.shape_cast %225 : vector<1x16x8xf32> to vector<16x8xf32>
    %227 = vector.broadcast %224 : f32 to vector<16x8xf32>
    %228 = arith.mulf %227, %226 : vector<16x8xf32>
    %229 = arith.addf %223, %228 : vector<16x8xf32>
    %c3_119 = arith.constant 3 : index
    %230 = memref.load %arg3[%c3_119] : memref<4xf32, #tpu.memory_space<smem>>
    %231 = vector.broadcast %230 : f32 to vector<16x8xf32>
    %232 = arith.addf %229, %231 : vector<16x8xf32>
    %cst_120 = arith.constant 0.000000e+00 : f32
    %233 = vector.broadcast %cst_120 : f32 to vector<16x8xf32>
    %234 = arith.maximumf %232, %233 : vector<16x8xf32>
    %c0_121 = arith.constant 0 : index
    %c24_122 = arith.constant 24 : index
    %235 = vector.load %arg7[%c0_121, %c24_122] : memref<16x32xf32, #tpu.memory_space<vmem>>, vector<16x8xf32>
    tpu.vector_store %arg7[%c0_121, %c24_122], %234 {strides = array<i32>} : memref<16x32xf32, #tpu.memory_space<vmem>>, vector<16x8xf32>,
    %c0_123 = arith.constant 0 : index
    %c0_124 = arith.constant 0 : index
    %236 = vector.load %arg7[%c0_123, %c0_124] : memref<16x32xf32, #tpu.memory_space<vmem>>, vector<16x32xf32>
    %c0_125 = arith.constant 0 : index
    %c0_126 = arith.constant 0 : index
    %237 = vector.load %arg4[%c0_125, %c0_126] : memref<32x128xf32, #tpu.memory_space<vmem>>, vector<32x128xf32>
    %cst_127 = arith.constant dense<0.000000e+00> : vector<16x128xf32>
    %238 = tpu.matmul %236, %237, %cst_127 {dimension_numbers = #tpu.dot_dimension_numbers<[1], [0], [0], [1], [0, 0, 1, 1], [], []>} : vector<16x32xf32>, vector<32x128xf32>, vector<16x128xf32> -> vector<16x128xf32>
    %c0_128 = arith.constant 0 : index
    %c0_129 = arith.constant 0 : index
    %239 = vector.load %arg5[%c0_128, %c0_129] : memref<1x128xf32, #tpu.memory_space<vmem>>, vector<1x128xf32>
    %240 = vector.broadcast %239 : vector<1x128xf32> to vector<16x128xf32>
    %241 = arith.addf %238, %240 : vector<16x128xf32>
    %c0_130 = arith.constant 0 : index
    %c0_131 = arith.constant 0 : index
    %242 = vector.load %arg6[%c0_130, %c0_131] : memref<16x128xf32, #tpu.memory_space<vmem>>, vector<16x128xf32>
    tpu.vector_store %arg6[%c0_130, %c0_131], %241 {strides = array<i32>} : memref<16x128xf32, #tpu.memory_space<vmem>>, vector<16x128xf32>,
    return
  }
  func.func @transform_0(%arg0: i32) -> (i32, i32, i32) {
    %c0_i32 = arith.constant 0 : i32
    %c0_i32_0 = arith.constant 0 : i32
    %c0_i32_1 = arith.constant 0 : i32
    return %c0_i32, %arg0, %c0_i32_0 : i32, i32, i32
  }
  func.func @transform_1(%arg0: i32) -> i32 {
    %c0_i32 = arith.constant 0 : i32
    %c0_i32_0 = arith.constant 0 : i32
    return %c0_i32 : i32
  }
  func.func @transform_2(%arg0: i32) -> i32 {
    %c0_i32 = arith.constant 0 : i32
    %c0_i32_0 = arith.constant 0 : i32
    return %c0_i32 : i32
  }
  func.func @transform_3(%arg0: i32) -> (i32, i32) {
    %c0_i32 = arith.constant 0 : i32
    %c0_i32_0 = arith.constant 0 : i32
    %c0_i32_1 = arith.constant 0 : i32
    return %c0_i32, %c0_i32_0 : i32, i32
  }
  func.func @transform_4(%arg0: i32) -> (i32, i32) {
    %c0_i32 = arith.constant 0 : i32
    %c0_i32_0 = arith.constant 0 : i32
    %c0_i32_1 = arith.constant 0 : i32
    return %c0_i32, %c0_i32_0 : i32, i32
  }
  func.func @transform_5(%arg0: i32) -> (i32, i32) {
    %c0_i32 = arith.constant 0 : i32
    %c0_i32_0 = arith.constant 0 : i32
    return %arg0, %c0_i32 : i32, i32
  }
}

</mosaic_0001>

<llo_original>
// kernel: tpu_custom_call.1
$region0: #{tpu_custom_call.1}
  #allocation0 [shape = 'u32[]', space=smem, size = 0x4, offset = 0x4, fixed_abs, tag = 'smem constant byte address 0x4 - core index']
  #allocation1 [shape = 'u32[72,128]{1,0:T(1,128)}', space=vmem, size = 0x9000, scoped, tag = 'internal scratch']
  #allocation2 [shape = 'f32[16,32]{1,0:T(8,128)}', space=vmem, size = 0x2000, scoped, tag = 'scratch operand']
  %s0 = inlined_call_operand.vmem [shape: f32[9,16,8], index: 0, kind: input, shape index: {}]
  %s1 = inlined_call_operand.vmem [shape: f32[36], index: 1, kind: input, shape index: {}]
  %s2 = inlined_call_operand.vmem [shape: f32[4], index: 2, kind: input, shape index: {}]
  %s3 = inlined_call_operand.vmem [shape: f32[32,128], index: 3, kind: input, shape index: {}]
  %s4 = inlined_call_operand.vmem [shape: f32[1,128], index: 4, kind: input, shape index: {}]
  %s5 = inlined_call_operand.hbm [shape: f32[16,128], index: 5, kind: output, shape index: {}]
  %s6 = sld [smem:[#allocation0]]
  $region38: #{tpu_custom_call.1} parent=0
    _
  %s8 = ssub.s32 1, %s6
  %s9 = scalar_select 0, %s8, %s6
  $region1: #{tpu_custom_call.1} parent=0
    #allocation3 [shape = 'u8[512]{0}', space=smem, size = 0x200, scoped, tag = 'input window, operand 1, single buffered']
    #allocation4 [shape = 's32[1]{0}', space=sflag, size = 0x4, scoped, tag = 'scoped memory for tpu_custom_call.1']
    #allocation5 [shape = 's32[1]{0}', space=sflag, size = 0x4, scoped, tag = 'scoped memory for tpu_custom_call.1']
    #allocation6 [shape = 'u8[512]{0}', space=smem, size = 0x200, scoped, tag = 'input window, operand 2, single buffered']
    #allocation7 [shape = 's32[1]{0}', space=sflag, size = 0x4, scoped, tag = 'scoped memory for tpu_custom_call.1']
    #allocation8 [shape = 'u8[8192]{0}', space=vmem, size = 0x2000, scoped, tag = 'output window, operand 0, single buffered']
    %10 = vsyncpa [#allocation5], 0
    %11 = vsyncpa [#allocation7], 0
    %12 = vsyncpa [#allocation4], 0
    // Predicated region
    $region2: #{tpu_custom_call.1} parent=1 // pred_check
      _
    $region3: #{tpu_custom_call.1} parent=1 // pred_check_branch
      %14 = sbr.rel (0) target = $region5
    $region4: #{tpu_custom_call.1} parent=1 // pred_region
      _
    $region5: #{tpu_custom_call.1} parent=1 // pred_fallthru
      _
    // Predicated region
    $region6: #{tpu_custom_call.1} parent=1 // pred_check
      _
    $region7: #{tpu_custom_call.1} parent=1 // pred_check_branch
      %16 = sbr.rel (0) target = $region9
    $region8: #{tpu_custom_call.1} parent=1 // pred_region
      %18 = vsyncadd [#allocation5], 0
      %s20 = sshll.u32 %s1, 4
      %s21 = int_to_ptr.vmem [resolvable:$true] %s20
      %23 = dma.vmem_to_smem %s21, 16, [#allocation3], [#allocation5]
    $region9: #{tpu_custom_call.1} parent=1 // pred_fallthru
      _
    // Predicated region
    $region10: #{tpu_custom_call.1} parent=1 // pred_check
      _
    $region11: #{tpu_custom_call.1} parent=1 // pred_check_branch
      %25 = sbr.rel (0) target = $region13
    $region12: #{tpu_custom_call.1} parent=1 // pred_region
      %27 = vsyncadd [#allocation7], 0
      %s29 = sshll.u32 %s2, 4
      %s30 = int_to_ptr.vmem [resolvable:$true] %s29
      %32 = dma.vmem_to_smem %s30, 16, [#allocation6], [#allocation7]
    $region13: #{tpu_custom_call.1} parent=1 // pred_fallthru
      _
    // Predicated region
    $region14: #{tpu_custom_call.1} parent=1 // pred_check
      _
    $region15: #{tpu_custom_call.1} parent=1 // pred_check_branch
      %34 = sbr.rel (0) target = $region17
    $region16: #{tpu_custom_call.1} parent=1 // pred_region
      _
    $region17: #{tpu_custom_call.1} parent=1 // pred_fallthru
      _
    // Predicated region
    $region18: #{tpu_custom_call.1} parent=1 // pred_check
      _
    $region19: #{tpu_custom_call.1} parent=1 // pred_check_branch
      %36 = sbr.rel (0) target = $region21
    $region20: #{tpu_custom_call.1} parent=1 // pred_region
      _
    $region21: #{tpu_custom_call.1} parent=1 // pred_fallthru
      _
    // Predicated region
    $region22: #{tpu_custom_call.1} parent=1 // pred_check
      _
    $region23: #{tpu_custom_call.1} parent=1 // pred_check_branch
      %38 = sbr.rel (0) target = $region25
    $region24: #{tpu_custom_call.1} parent=1 // pred_region
      %40 = dma.done [#allocation5], 16
    $region25: #{tpu_custom_call.1} parent=1 // pred_fallthru
      _
    // Predicated region
    $region26: #{tpu_custom_call.1} parent=1 // pred_check
      _
    $region27: #{tpu_custom_call.1} parent=1 // pred_check_branch
      %42 = sbr.rel (0) target = $region29
    $region28: #{tpu_custom_call.1} parent=1 // pred_region
      %44 = dma.done [#allocation7], 16
    $region29: #{tpu_custom_call.1} parent=1 // pred_fallthru
      _
    %45 = sfence
    %s46 = sld [smem:[#allocation3]]
    %v47 = vld [vmem:[%s0] sm:$0xff]
    %v48 = vld [vmem:[%s0 + $0x8] sm:$0xff]
    %v49 = vstv %s46
    %v50 = vmul.f32 %v49, %v47
    %v51 = vmul.f32 %v49, %v48
    %s52 = sld [smem:[#allocation3 + $0x1]]
    %s53 = scalar_lea.vmem %s0, 16
    %v54 = vld [vmem:[%s53] sm:$0xff]
    %v55 = vld [vmem:[%s53 + $0x8] sm:$0xff]
    %v56 = vstv %s52
    %v57 = vmul.f32 %v56, %v54
    %v58 = vmul.f32 %v56, %v55
    %v59 = vadd.f32 %v50, %v57
    %v60 = vadd.f32 %v51, %v58
    %s61 = sld [smem:[#allocation3 + $0x2]]
    %s62 = scalar_lea.vmem %s0, 32
    %v63 = vld [vmem:[%s62] sm:$0xff]
    %v64 = vld [vmem:[%s62 + $0x8] sm:$0xff]
    %v65 = vstv %s61
    %v66 = vmul.f32 %v65, %v63
    %v67 = vmul.f32 %v65, %v64
    %v68 = vadd.f32 %v59, %v66
    %v69 = vadd.f32 %v60, %v67
    %s70 = sld [smem:[#allocation3 + $0x3]]
    %s71 = scalar_lea.vmem %s0, 48
    %v72 = vld [vmem:[%s71] sm:$0xff]
    %v73 = vld [vmem:[%s71 + $0x8] sm:$0xff]
    %v74 = vstv %s70
    %v75 = vmul.f32 %v74, %v72
    %v76 = vmul.f32 %v74, %v73
    %v77 = vadd.f32 %v68, %v75
    %v78 = vadd.f32 %v69, %v76
    %s79 = sld [smem:[#allocation3 + $0x4]]
    %s80 = scalar_lea.vmem %s0, 64
    %v81 = vld [vmem:[%s80] sm:$0xff]
    %v82 = vld [vmem:[%s80 + $0x8] sm:$0xff]
    %v83 = vstv %s79
    %v84 = vmul.f32 %v83, %v81
    %v85 = vmul.f32 %v83, %v82
    %v86 = vadd.f32 %v77, %v84
    %v87 = vadd.f32 %v78, %v85
    %s88 = sld [smem:[#allocation3 + $0x5]]
    %s89 = scalar_lea.vmem %s0, 80
    %v90 = vld [vmem:[%s89] sm:$0xff]
    %v91 = vld [vmem:[%s89 + $0x8] sm:$0xff]
    %v92 = vstv %s88
    %v93 = vmul.f32 %v92, %v90
    %v94 = vmul.f32 %v92, %v91
    %v95 = vadd.f32 %v86, %v93
    %v96 = vadd.f32 %v87, %v94
    %s97 = sld [smem:[#allocation3 + $0x6]]
    %s98 = scalar_lea.vmem %s0, 96
    %v99 = vld [vmem:[%s98] sm:$0xff]
    %v100 = vld [vmem:[%s98 + $0x8] sm:$0xff]
    %v101 = vstv %s97
    %v102 = vmul.f32 %v101, %v99
    %v103 = vmul.f32 %v101, %v100
    %v104 = vadd.f32 %v95, %v102
    %v105 = vadd.f32 %v96, %v103
    %s106 = sld [smem:[#allocation3 + $0x7]]
    %s107 = scalar_lea.vmem %s0, 112
    %v108 = vld [vmem:[%s107] sm:$0xff]
    %v109 = vld [vmem:[%s107 + $0x8] sm:$0xff]
    %v110 = vstv %s106
    %v111 = vmul.f32 %v110, %v108
    %v112 = vmul.f32 %v110, %v109
    %v113 = vadd.f32 %v104, %v111
    %v114 = vadd.f32 %v105, %v112
    %s115 = sld [smem:[#allocation3 + $0x8]]
    %s116 = scalar_lea.vmem %s0, 128
    %v117 = vld [vmem:[%s116] sm:$0xff]
    %v118 = vld [vmem:[%s116 + $0x8] sm:$0xff]
    %v119 = vstv %s115
    %v120 = vmul.f32 %v119, %v117
    %v121 = vmul.f32 %v119, %v118
    %v122 = vadd.f32 %v113, %v120
    %v123 = vadd.f32 %v114, %v121
    %s124 = sld [smem:[#allocation6]]
    %v125 = vstv %s124
    %v126 = vadd.f32 %v122, %v125
    %v127 = vadd.f32 %v123, %v125
    %v128 = vmax.f32 %v126, 0.0
    %v129 = vmax.f32 %v127, 0.0
    %vm130 = vcmask 64512
    %131 = vst.msk [vmem:[#allocation2] sm:$0xff] %vm130, %v128
    %132 = vst.msk [vmem:[#allocation2 + $0x8] sm:$0xff] %vm130, %v129
    %s133 = sld [smem:[#allocation3 + $0x9]]
    %v134 = vld [vmem:[%s0] sm:$0xff]
    %v135 = vld [vmem:[%s0 + $0x8] sm:$0xff]
    %v136 = vstv %s133
    %v137 = vmul.f32 %v136, %v134
    %v138 = vmul.f32 %v136, %v135
    %s139 = sld [smem:[#allocation3 + $0xa]]
    %v140 = vld [vmem:[%s53] sm:$0xff]
    %v141 = vld [vmem:[%s53 + $0x8] sm:$0xff]
    %v142 = vstv %s139
    %v143 = vmul.f32 %v142, %v140
    %v144 = vmul.f32 %v142, %v141
    %v145 = vadd.f32 %v137, %v143
    %v146 = vadd.f32 %v138, %v144
    %s147 = sld [smem:[#allocation3 + $0xb]]
    %v148 = vld [vmem:[%s62] sm:$0xff]
    %v149 = vld [vmem:[%s62 + $0x8] sm:$0xff]
    %v150 = vstv %s147
    %v151 = vmul.f32 %v150, %v148
    %v152 = vmul.f32 %v150, %v149
    %v153 = vadd.f32 %v145, %v151
    %v154 = vadd.f32 %v146, %v152
    %s155 = sld [smem:[#allocation3 + $0xc]]
    %v156 = vld [vmem:[%s71] sm:$0xff]
    %v157 = vld [vmem:[%s71 + $0x8] sm:$0xff]
    %v158 = vstv %s155
    %v159 = vmul.f32 %v158, %v156
    %v160 = vmul.f32 %v158, %v157
    %v161 = vadd.f32 %v153, %v159
    %v162 = vadd.f32 %v154, %v160
    %s163 = sld [smem:[#allocation3 + $0xd]]
    %v164 = vld [vmem:[%s80] sm:$0xff]
    %v165 = vld [vmem:[%s80 + $0x8] sm:$0xff]
    %v166 = vstv %s163
    %v167 = vmul.f32 %v166, %v164
    %v168 = vmul.f32 %v166, %v165
    %v169 = vadd.f32 %v161, %v167
    %v170 = vadd.f32 %v162, %v168
    %s171 = sld [smem:[#allocation3 + $0xe]]
    %v172 = vld [vmem:[%s89] sm:$0xff]
    %v173 = vld [vmem:[%s89 + $0x8] sm:$0xff]
    %v174 = vstv %s171
    %v175 = vmul.f32 %v174, %v172
    %v176 = vmul.f32 %v174, %v173
    %v177 = vadd.f32 %v169, %v175
    %v178 = vadd.f32 %v170, %v176
    %s179 = sld [smem:[#allocation3 + $0xf]]
    %v180 = vld [vmem:[%s98] sm:$0xff]
    %v181 = vld [vmem:[%s98 + $0x8] sm:$0xff]
    %v182 = vstv %s179
    %v183 = vmul.f32 %v182, %v180
    %v184 = vmul.f32 %v182, %v181
    %v185 = vadd.f32 %v177, %v183
    %v186 = vadd.f32 %v178, %v184
    %s187 = sld [smem:[#allocation3 + $0x10]]
    %v188 = vld [vmem:[%s107] sm:$0xff]
    %v189 = vld [vmem:[%s107 + $0x8] sm:$0xff]
    %v190 = vstv %s187
    %v191 = vmul.f32 %v190, %v188
    %v192 = vmul.f32 %v190, %v189
    %v193 = vadd.f32 %v185, %v191
    %v194 = vadd.f32 %v186, %v192
    %s195 = sld [smem:[#allocation3 + $0x11]]
    %v196 = vld [vmem:[%s116] sm:$0xff]
    %v197 = vld [vmem:[%s116 + $0x8] sm:$0xff]
    %v198 = vstv %s195
    %v199 = vmul.f32 %v198, %v196
    %v200 = vmul.f32 %v198, %v197
    %v201 = vadd.f32 %v193, %v199
    %v202 = vadd.f32 %v194, %v200
    %s203 = sld [smem:[#allocation6 + $0x1]]
    %v204 = vstv %s203
    %v205 = vadd.f32 %v201, %v204
    %v206 = vadd.f32 %v202, %v204
    %v207 = vmax.f32 %v205, 0.0
    %v208 = vmax.f32 %v206, 0.0
    %211 = vrot.lane.b32.xlu0 %v207, 8
    %v212 = vpop.permute.xlu0 %211
    %213 = vrot.lane.b32.xlu0 %v208, 8
    %v214 = vpop.permute.xlu0 %213
    %vm217 = vcmask 130112
    %218 = vst.msk [vmem:[#allocation2] sm:$0xff] %vm217, %v212
    %219 = vst.msk [vmem:[#allocation2 + $0x8] sm:$0xff] %vm217, %v214
    %s220 = sld [smem:[#allocation3 + $0x12]]
    %v221 = vld [vmem:[%s0] sm:$0xff]
    %v222 = vld [vmem:[%s0 + $0x8] sm:$0xff]
    %v223 = vstv %s220
    %v224 = vmul.f32 %v223, %v221
    %v225 = vmul.f32 %v223, %v222
    %s226 = sld [smem:[#allocation3 + $0x13]]
    %v227 = vld [vmem:[%s53] sm:$0xff]
    %v228 = vld [vmem:[%s53 + $0x8] sm:$0xff]
    %v229 = vstv %s226
    %v230 = vmul.f32 %v229, %v227
    %v231 = vmul.f32 %v229, %v228
    %v232 = vadd.f32 %v224, %v230
    %v233 = vadd.f32 %v225, %v231
    %s234 = sld [smem:[#allocation3 + $0x14]]
    %v235 = vld [vmem:[%s62] sm:$0xff]
    %v236 = vld [vmem:[%s62 + $0x8] sm:$0xff]
    %v237 = vstv %s234
    %v238 = vmul.f32 %v237, %v235
    %v239 = vmul.f32 %v237, %v236
    %v240 = vadd.f32 %v232, %v238
    %v241 = vadd.f32 %v233, %v239
    %s242 = sld [smem:[#allocation3 + $0x15]]
    %v243 = vld [vmem:[%s71] sm:$0xff]
    %v244 = vld [vmem:[%s71 + $0x8] sm:$0xff]
    %v245 = vstv %s242
    %v246 = vmul.f32 %v245, %v243
    %v247 = vmul.f32 %v245, %v244
    %v248 = vadd.f32 %v240, %v246
    %v249 = vadd.f32 %v241, %v247
    %s250 = sld [smem:[#allocation3 + $0x16]]
    %v251 = vld [vmem:[%s80] sm:$0xff]
    %v252 = vld [vmem:[%s80 + $0x8] sm:$0xff]
    %v253 = vstv %s250
    %v254 = vmul.f32 %v253, %v251
    %v255 = vmul.f32 %v253, %v252
    %v256 = vadd.f32 %v248, %v254
    %v257 = vadd.f32 %v249, %v255
    %s258 = sld [smem:[#allocation3 + $0x17]]
    %v259 = vld [vmem:[%s89] sm:$0xff]
    %v260 = vld [vmem:[%s89 + $0x8] sm:$0xff]
    %v261 = vstv %s258
    %v262 = vmul.f32 %v261, %v259
    %v263 = vmul.f32 %v261, %v260
    %v264 = vadd.f32 %v256, %v262
    %v265 = vadd.f32 %v257, %v263
    %s266 = sld [smem:[#allocation3 + $0x18]]
    %v267 = vld [vmem:[%s98] sm:$0xff]
    %v268 = vld [vmem:[%s98 + $0x8] sm:$0xff]
    %v269 = vstv %s266
    %v270 = vmul.f32 %v269, %v267
    %v271 = vmul.f32 %v269, %v268
    %v272 = vadd.f32 %v264, %v270
    %v273 = vadd.f32 %v265, %v271
    %s274 = sld [smem:[#allocation3 + $0x19]]
    %v275 = vld [vmem:[%s107] sm:$0xff]
    %v276 = vld [vmem:[%s107 + $0x8] sm:$0xff]
    %v277 = vstv %s274
    %v278 = vmul.f32 %v277, %v275
    %v279 = vmul.f32 %v277, %v276
    %v280 = vadd.f32 %v272, %v278
    %v281 = vadd.f32 %v273, %v279
    %s282 = sld [smem:[#allocation3 + $0x1a]]
    %v283 = vld [vmem:[%s116] sm:$0xff]
    %v284 = vld [vmem:[%s116 + $0x8] sm:$0xff]
    %v285 = vstv %s282
    %v286 = vmul.f32 %v285, %v283
    %v287 = vmul.f32 %v285, %v284
    %v288 = vadd.f32 %v280, %v286
    %v289 = vadd.f32 %v281, %v287
    %s290 = sld [smem:[#allocation6 + $0x2]]
    %v291 = vstv %s290
    %v292 = vadd.f32 %v288, %v291
    %v293 = vadd.f32 %v289, %v291
    %v294 = vmax.f32 %v292, 0.0
    %v295 = vmax.f32 %v293, 0.0
    %298 = vrot.lane.b32.xlu0 %v294, 16
    %v299 = vpop.permute.xlu0 %298
    %300 = vrot.lane.b32.xlu0 %v295, 16
    %v301 = vpop.permute.xlu0 %300
    %vm304 = vcmask 195712
    %305 = vst.msk [vmem:[#allocation2] sm:$0xff] %vm304, %v299
    %306 = vst.msk [vmem:[#allocation2 + $0x8] sm:$0xff] %vm304, %v301
    %s307 = sld [smem:[#allocation3 + $0x1b]]
    %v308 = vld [vmem:[%s0] sm:$0xff]
    %v309 = vld [vmem:[%s0 + $0x8] sm:$0xff]
    %v310 = vstv %s307
    %v311 = vmul.f32 %v310, %v308
    %v312 = vmul.f32 %v310, %v309
    %s313 = sld [smem:[#allocation3 + $0x1c]]
    %v314 = vld [vmem:[%s53] sm:$0xff]
    %v315 = vld [vmem:[%s53 + $0x8] sm:$0xff]
    %v316 = vstv %s313
    %v317 = vmul.f32 %v316, %v314
    %v318 = vmul.f32 %v316, %v315
    %v319 = vadd.f32 %v311, %v317
    %v320 = vadd.f32 %v312, %v318
    %s321 = sld [smem:[#allocation3 + $0x1d]]
    %v322 = vld [vmem:[%s62] sm:$0xff]
    %v323 = vld [vmem:[%s62 + $0x8] sm:$0xff]
    %v324 = vstv %s321
    %v325 = vmul.f32 %v324, %v322
    %v326 = vmul.f32 %v324, %v323
    %v327 = vadd.f32 %v319, %v325
    %v328 = vadd.f32 %v320, %v326
    %s329 = sld [smem:[#allocation3 + $0x1e]]
    %v330 = vld [vmem:[%s71] sm:$0xff]
    %v331 = vld [vmem:[%s71 + $0x8] sm:$0xff]
    %v332 = vstv %s329
    %v333 = vmul.f32 %v332, %v330
    %v334 = vmul.f32 %v332, %v331
    %v335 = vadd.f32 %v327, %v333
    %v336 = vadd.f32 %v328, %v334
    %s337 = sld [smem:[#allocation3 + $0x1f]]
    %v338 = vld [vmem:[%s80] sm:$0xff]
    %v339 = vld [vmem:[%s80 + $0x8] sm:$0xff]
    %v340 = vstv %s337
    %v341 = vmul.f32 %v340, %v338
    %v342 = vmul.f32 %v340, %v339
    %v343 = vadd.f32 %v335, %v341
    %v344 = vadd.f32 %v336, %v342
    %s345 = sld [smem:[#allocation3 + $0x20]]
    %v346 = vld [vmem:[%s89] sm:$0xff]
    %v347 = vld [vmem:[%s89 + $0x8] sm:$0xff]
    %v348 = vstv %s345
    %v349 = vmul.f32 %v348, %v346
    %v350 = vmul.f32 %v348, %v347
    %v351 = vadd.f32 %v343, %v349
    %v352 = vadd.f32 %v344, %v350
    %s353 = sld [smem:[#allocation3 + $0x21]]
    %v354 = vld [vmem:[%s98] sm:$0xff]
    %v355 = vld [vmem:[%s98 + $0x8] sm:$0xff]
    %v356 = vstv %s353
    %v357 = vmul.f32 %v356, %v354
    %v358 = vmul.f32 %v356, %v355
    %v359 = vadd.f32 %v351, %v357
    %v360 = vadd.f32 %v352, %v358
    %s361 = sld [smem:[#allocation3 + $0x22]]
    %v362 = vld [vmem:[%s107] sm:$0xff]
    %v363 = vld [vmem:[%s107 + $0x8] sm:$0xff]
    %v364 = vstv %s361
    %v365 = vmul.f32 %v364, %v362
    %v366 = vmul.f32 %v364, %v363
    %v367 = vadd.f32 %v359, %v365
    %v368 = vadd.f32 %v360, %v366
    %s369 = sld [smem:[#allocation3 + $0x23]]
    %v370 = vld [vmem:[%s116] sm:$0xff]
    %v371 = vld [vmem:[%s116 + $0x8] sm:$0xff]
    %v372 = vstv %s369
    %v373 = vmul.f32 %v372, %v370
    %v374 = vmul.f32 %v372, %v371
    %v375 = vadd.f32 %v367, %v373
    %v376 = vadd.f32 %v368, %v374
    %s377 = sld [smem:[#allocation6 + $0x3]]
    %v378 = vstv %s377
    %v379 = vadd.f32 %v375, %v378
    %v380 = vadd.f32 %v376, %v378
    %v381 = vmax.f32 %v379, 0.0
    %v382 = vmax.f32 %v380, 0.0
    %385 = vrot.lane.b32.xlu0 %v381, 24
    %v386 = vpop.permute.xlu0 %385
    %387 = vrot.lane.b32.xlu0 %v382, 24
    %v388 = vpop.permute.xlu0 %387
    %vm391 = vcmask 261312
    %392 = vst.msk [vmem:[#allocation2] sm:$0xff] %vm391, %v386
    %393 = vst.msk [vmem:[#allocation2 + $0x8] sm:$0xff] %vm391, %v388
    %v394 = vld [vmem:[#allocation2] sm:$0xff]
    %v395 = vld [vmem:[#allocation2 + $0x8] sm:$0xff]
    %v396 = vld [vmem:[%s3] sm:$0xff]
    %v397 = vld [vmem:[%s3 + $0x8] sm:$0xff]
    %v398 = vld [vmem:[%s3 + $0x10] sm:$0xff]
    %v399 = vld [vmem:[%s3 + $0x18] sm:$0xff]
    %v400 = vld [vmem:[%s4] sm:$0x1]
    %v402 = vperm.slane %v400, 0
    %vm404 = vcmask 261120
    %v406 = vsel %vm404, %v394, 0
    %v409 = vsel %vm404, %v395, 0
    %411 = vmatpush.msra.mxu0 0.0
    %412 = vmatpush.msra.mxu0 0.0
    %413 = vmatpush.msra.mxu0 0.0
    %414 = vmatpush.msra.mxu0 0.0
    %415 = vmatpush.msra.mxu0 0.0
    %416 = vmatpush.msra.mxu0 0.0
    %417 = vmatpush.msra.mxu0 0.0
    %418 = vmatpush.msra.mxu0 0.0
    %419 = vmatpush.msra.mxu0 0.0
    %420 = vmatpush.msra.mxu0 0.0
    %421 = vmatpush.msra.mxu0 0.0
    %422 = vmatpush.msra.mxu0 0.0
    %423 = vmatpush.msra.mxu0 %v399
    %424 = vmatpush.msra.mxu0 %v398
    %425 = vmatpush.msra.mxu0 %v397
    %426 = vmatpush.msra.mxu0 %v396
    %427 = vmatmul.f32.gmra.mxu0 %v406
    %v428 = vpop.f32.mrf.mxu0
    %v429 = vadd.f32 %v402, %v428
    %430 = vmatmul.f32.gmra.mxu0 %v409
    %v431 = vpop.f32.mrf.mxu0
    %v432 = vadd.f32 %v402, %v431
    %433 = vdwg.mxu0
    %434 = vst [vmem:[#allocation8] sm:$0xff] %v429
    %435 = vst [vmem:[#allocation8 + $0x8] sm:$0xff] %v432
    // Predicated region
    $region30: #{tpu_custom_call.1} parent=1 // pred_check
      _
    $region31: #{tpu_custom_call.1} parent=1 // pred_check_branch
      %437 = sbr.rel (0) target = $region33
    $region32: #{tpu_custom_call.1} parent=1 // pred_region
      %439 = vsyncadd [#allocation4], 0
      %s440 = sshll.u32 [#allocation8], 4
      %s441 = int_to_ptr.vmem [resolvable:$true] %s440
      %s442 = sshll.u32 %s5, 4
      %s443 = int_to_ptr.hbm [resolvable:$true] %s442
      %448 = dma.vmem_to_hbm [thread:$0]  %s441, 256, %s443, [#allocation4], 128, 128, 8
    $region33: #{tpu_custom_call.1} parent=1 // pred_fallthru
      _
    // Predicated region
    $region34: #{tpu_custom_call.1} parent=1 // pred_check
      _
    $region35: #{tpu_custom_call.1} parent=1 // pred_check_branch
      %450 = sbr.rel (0) target = $region37
    $region36: #{tpu_custom_call.1} parent=1 // pred_region
      %452 = dma.done [#allocation4], 256
    $region37: #{tpu_custom_call.1} parent=1 // pred_fallthru
      _
    %453 = vsyncpa [#allocation4], 1
    %454 = vsyncpa [#allocation5], 1
    %455 = vsyncpa [#allocation7], 1

</llo_original>
